<compile_context>
chip_gen: v6e
topology: v6e:2x2x1
jax: 0.10.0
libtpu: 0.0.40
codegen_flags: <defaults>
</compile_context>

<pallas_src>
import jax
import jax.numpy as jnp
from jax.experimental import pallas as pl
from jax.experimental.pallas import tpu as pltpu


_PALLAS_MIN_BYTES = 1 << 20  # below this, launch overhead >> copy cost: skip Pallas


def _dma_identity_kernel(x_hbm_ref, o_hbm_ref, sem):
    # Whole-array HBM -> HBM DMA.  No grid, no padding, no VMEM staging.
    cp = pltpu.make_async_copy(x_hbm_ref, o_hbm_ref, sem)
    cp.start()
    cp.wait()


@jax.jit
def pallas_identity_copy(x: jax.Array) -> jax.Array:
    """Bit-exact identity of `x` routed through a single Pallas HBM->HBM DMA.

    No padding, no post-slice, no VMEM buffering: the copy runs purely on the
    DMA engines at the 2*n-byte HBM floor on every TPU generation.
    """
    if x.ndim == 0 or x.size == 0:
        return x

    nbytes = x.size * x.dtype.itemsize
    return pl.pallas_call(
        _dma_identity_kernel,
        out_shape=jax.ShapeDtypeStruct(x.shape, x.dtype),
        in_specs=[pl.BlockSpec(memory_space=pl.ANY)],
        out_specs=pl.BlockSpec(memory_space=pl.ANY),
        scratch_shapes=[pltpu.SemaphoreType.DMA(())],
        cost_estimate=pl.CostEstimate(
            flops=0, transcendentals=0, bytes_accessed=2 * nbytes),
    )(x)


class KtNextBackbonePallas:
    """JAX/Pallas equivalent of kt_NEXT_Backbone (a no-op backbone)."""

    def __init__(self, model_cfg=None, copy_through_pallas=False, **kwargs):
        self.model_cfg = model_cfg
        # The reference forward() is identity; by default we return the dict
        # untouched (zero copies, the optimal path).  Set
        # copy_through_pallas=True only if a TPU data path is explicitly
        # required; large tensors then go through the single-DMA copy kernel.
        self.copy_through_pallas = copy_through_pallas

    def forward(self, batch_dict: dict) -> dict:
        if not self.copy_through_pallas:
            # Exact semantics of the PyTorch module: return the dict as-is.
            return batch_dict

        out = {}
        for key, value in batch_dict.items():
            if (isinstance(value, jax.Array)
                    and value.size * value.dtype.itemsize >= _PALLAS_MIN_BYTES):
                out[key] = pallas_identity_copy(value)
            else:
                # Tiny tensors / python scalars: launch overhead not worth it.
                out[key] = value
        return out

    __call__ = forward


if __name__ == "__main__":
    key = jax.random.PRNGKey(0)
    k1, k2, k3 = jax.random.split(key, 3)

    # Small, deterministic example batch_dict consistent with a detection
    # pipeline backbone input (NCHW spatial features + a point tensor).
    batch_dict = {
        "batch_size": 2,
        "spatial_features": jax.random.normal(k1, (2, 4, 16, 16), dtype=jnp.float32),
        "points": jax.random.normal(k2, (2, 8, 4), dtype=jnp.float32),
    }

    # 1) Default (production) path: true no-op, exactly like the PyTorch module.
    backbone = KtNextBackbonePallas(model_cfg=None)
    out_dict = backbone(batch_dict)
    assert out_dict is batch_dict                       # identity semantics preserved
    assert out_dict["batch_size"] == batch_dict["batch_size"]
    assert out_dict["spatial_features"] is batch_dict["spatial_features"]
    assert out_dict["points"] is batch_dict["points"]

    # 2) Opt-in Pallas path: single HBM->HBM DMA identity, no padding needed
    #    for any shape (aligned, ragged, or narrow-dtype).
    y_spatial = pallas_identity_copy(batch_dict["spatial_features"])  # 2048 elems (aligned)
    ragged = jax.random.normal(k3, (3, 7, 5), dtype=jnp.float32)      # not a multiple of 1024
    y_ragged = pallas_identity_copy(ragged)
    pts_bf16 = batch_dict["points"].astype(jnp.bfloat16)              # sub-32-bit dtype
    y_bf16 = pallas_identity_copy(pts_bf16)
    jax.block_until_ready((y_spatial, y_ragged, y_bf16))

    assert jnp.array_equal(y_spatial, batch_dict["spatial_features"])
    assert jnp.array_equal(y_ragged, ragged)
    assert jnp.array_equal(y_bf16, pts_bf16)

    # TODO(synk): module has no parameters and no compute; the Pallas kernel is
    # only an (optional) identity pass-through of large batch_dict tensors.
    print("KERNEL_OK")
</pallas_src>

<mosaic_0001>
module attributes {stable_mosaic.version = 11 : i64} {
  func.func @_dma_identity_kernel(%arg0: memref<2x4x16x16xf32, #tpu.memory_space<any>>, %arg1: memref<2x4x16x16xf32, #tpu.memory_space<any>>, %arg2: memref<!tpu.dma_semaphore, #tpu.memory_space<semaphore_mem>>) attributes {dimension_semantics = [], scalar_prefetch = 0 : i64, scratch_operands = 1 : i64, tpu.core_type = #tpu.core_type<tc>} {
    tpu.enqueue_dma source(%arg0 : memref<2x4x16x16xf32, #tpu.memory_space<any>>) target(%arg1 : memref<2x4x16x16xf32, #tpu.memory_space<any>>) target_semaphore(%arg2 : memref<!tpu.dma_semaphore, #tpu.memory_space<semaphore_mem>>)
    tpu.wait_dma2 semaphore(%arg2 : memref<!tpu.dma_semaphore, #tpu.memory_space<semaphore_mem>>) src(%arg0 : memref<2x4x16x16xf32, #tpu.memory_space<any>>) dst(%arg1 : memref<2x4x16x16xf32, #tpu.memory_space<any>>)
    return
  }
}

</mosaic_0001>

<llo_original>
// kernel: pallas_identity_copy.1
$region0: #{pallas_identity_copy.1}
  #allocation0 [shape = 'u32[]', space=smem, size = 0x4, offset = 0x4, fixed_abs, tag = 'smem constant byte address 0x4 - core index']
  #allocation1 [shape = 'u32[144,128]{1,0:T(1,128)}', space=vmem, size = 0x12000, scoped, tag = 'internal scratch']
  #allocation2 [shape = 's32[1]{0}', space=sflag, size = 0x4, scoped, tag = 'scratch operand']
  #allocation3 [shape = 's32[]', space=sflag, size = 0x4, offset = 0, fixed_abs, tag = 'sflag constant byte address 0x0 - dummy sync flag']
  #allocation4 [shape = 'u32[0]{0}', space=smem, size = 0, offset = 0, fixed_abs, tag = 'smem constant byte address 0x0 - null']
  %s0 = inlined_call_operand.hbm [shape: f32[2,4,16,16], index: 0, kind: input, shape index: {}]
  %s1 = inlined_call_operand.hbm [shape: f32[2,4,16,16], index: 1, kind: output, shape index: {}]
  %s2 = sld [smem:[#allocation0]]
  $region2: #{pallas_identity_copy.1} parent=0
    _
  %s4 = ssub.s32 1, %s2
  %s5 = scalar_select 0, %s4, %s2
  %s7 = sshll.u32 1, 14
  %s8 = sxor.u32 4294967295, %s7
  %12 = dma.general %s0, 2048, %s1, [#allocation2], 131072, [#allocation4], 0, 0
  %s13 = smul.u32 2, 4
  %s14 = smul.u32 %s13, 16
  %s15 = smul.u32 %s14, 1
  %s16 = sshll.u32 %s15, 4
  %17 = dma.done [#allocation2], %s16
  %18 = vsyncmov [#allocation2]
  %s19 = vpop.sfrf %18
  %p20 = scmp.eq.s32.totalorder %s19, 0
  %p21 = pneg %p20
  %23 = shalt.err (%p21)

</llo_original>
